<compile_context>
chip_gen: v5e
topology: v5e:2x2
jax: 0.10.0
libtpu: 0.0.40
codegen_flags: <defaults>
</compile_context>

<pallas_src>
import functools
import math

import numpy as np
import jax
import jax.numpy as jnp
from jax.experimental import pallas as pl
from jax.experimental.pallas import tpu as pltpu


def _round_up(x, m):
    return (x + m - 1) // m * m


def _srl32(v, k):
    # Logical right shift on int32 via arithmetic shift + mask (portable to
    # both Mosaic and interpret mode).
    return (v >> k) & ((1 << (32 - k)) - 1)


def _hash32(v):
    # Murmur3 fmix32 finalizer (int32 wraparound arithmetic).
    v = v ^ _srl32(v, 16)
    v = v * (0x85EBCA6B - (1 << 32))
    v = v ^ _srl32(v, 13)
    v = v * (0xC2B2AE35 - (1 << 32))
    v = v ^ _srl32(v, 16)
    return v


def word_embed_kernel(w_ref, b_ref, seed_ref, x_ref, out_ref, *,
                      F_out, G, pad_left, gram_pads, p_drop):
    # w_ref   : SMEM (G, G)  packed conv weights (row i holds kernel of size i+1)
    # b_ref   : SMEM (G,)    conv biases
    # seed_ref: SMEM (1,)    dropout seed
    # x_ref   : VMEM (B_TILE, F_in)  zero-padded input; original column m sits
    #                                at lane pad_left + m
    # out_ref : VMEM (B_TILE, F_out) lane-dense output tile (F_out % 128 == 0)
    B_tile = out_ref.shape[0]
    x = x_ref[...]

    # Hoist the G distinct lane shifts out of the per-gram loops: slice once,
    # reuse for every conv tap that needs offset s.
    shifts = [x[:, s:s + F_out] for s in range(G)]

    result = None
    for i in range(G):                       # gram i has kernel size n = i + 1
        n = i + 1
        base = pad_left - gram_pads[i]       # lane offset of tap k = 0
        acc = w_ref[i, 0] * shifts[base]
        for k in range(1, n):
            acc = acc + w_ref[i, k] * shifts[base + k]
        acc = acc + b_ref[i]                 # scalar bias added once per gram
        result = acc if result is None else jnp.maximum(result, acc)

    y = jnp.tanh(result)

    # F.dropout defaults: p = 0.5, training=True -> mask and scale by 1/(1-p).
    # Stateless per-element hash keyed on (seed, global row, column) so each
    # grid tile gets an independent mask; full-width threshold compare so
    # p_drop != 0.5 also works.
    # TODO(synk): RNG stream cannot bit-match torch's dropout.
    row = (jax.lax.broadcasted_iota(jnp.int32, (B_tile, F_out), 0)
           + pl.program_id(0) * B_tile)
    col = jax.lax.broadcasted_iota(jnp.int32, (B_tile, F_out), 1)
    h = _hash32(row * 0x0019660D + col + seed_ref[0] * 0x3C6EF35F)
    uniform = (h & 0x00FFFFFF).astype(jnp.float32) * (1.0 / (1 << 24))
    keep = uniform < (1.0 - p_drop)
    y = jnp.where(keep, y * (1.0 / (1.0 - p_drop)), 0.0)

    out_ref[...] = y.astype(out_ref.dtype)


def word_embed(x, weights, biases, seed, word_gram_num, *, p_drop=0.5):
    """Forward pass of WordEmbed.

    x: (B, F) float32. weights[i]: (i+1,) conv kernel. biases[i]: scalar.
    Returns (B, F) float32.
    """
    B, F = x.shape
    G = word_gram_num
    gram_pads = tuple(int(math.ceil((n - 1) / 2.0)) for n in range(1, G + 1))
    pad_left = max(gram_pads)                      # left halo (zeros)

    # Lane-dense output tile; the input tile carries the conv halo inside the
    # same single pad (no separate halo pass over HBM).
    F_out = _round_up(F, 128)
    F_in = _round_up(F_out + G, 128)               # room for shifts 0..G-1

    # Batch tile: multiple of 8 sublanes, sized so in+out blocks stay ~<=2 MiB
    # (double-buffered pipeline fits easily in v7x's 64 MiB VMEM).
    bytes_per_row = (F_in + F_out) * 4
    b_rows = max(8, min(512, (2 * 1024 * 1024 // bytes_per_row) // 8 * 8))
    B_pad = _round_up(B, 8)
    B_tile = min(b_rows, B_pad)
    B_pad = _round_up(B_pad, B_tile)

    xp = jnp.pad(x.astype(jnp.float32),
                 ((0, B_pad - B), (pad_left, F_in - pad_left - F)))

    w_packed = jnp.zeros((G, G), jnp.float32)
    for i, w in enumerate(weights):
        w_packed = w_packed.at[i, : i + 1].set(jnp.asarray(w, jnp.float32))
    b_packed = jnp.stack([jnp.asarray(b, jnp.float32) for b in biases])
    seed_arr = jnp.asarray([seed], jnp.int32)

    kernel = functools.partial(
        word_embed_kernel, F_out=F_out, G=G, pad_left=pad_left,
        gram_pads=gram_pads, p_drop=p_drop)

    grid = (B_pad // B_tile,)
    flops = B_pad * F_out * (G * (G + 1) + 2 * G + 6)

    out = pl.pallas_call(
        kernel,
        grid=grid,
        in_specs=[
            pl.BlockSpec(memory_space=pltpu.MemorySpace.SMEM),   # conv weights
            pl.BlockSpec(memory_space=pltpu.MemorySpace.SMEM),   # conv biases
            pl.BlockSpec(memory_space=pltpu.MemorySpace.SMEM),   # dropout seed
            pl.BlockSpec((B_tile, F_in), lambda i: (i, 0)),      # padded x
        ],
        out_specs=pl.BlockSpec((B_tile, F_out), lambda i: (i, 0)),
        out_shape=jax.ShapeDtypeStruct((B_pad, F_out), jnp.float32),
        compiler_params=pltpu.CompilerParams(
            dimension_semantics=("parallel",),        # megacore on v7x
            vmem_limit_bytes=32 * 1024 * 1024),
        cost_estimate=pl.CostEstimate(
            flops=flops,
            transcendentals=B_pad * F_out,
            bytes_accessed=B_pad * (F_in + F_out) * 4),
    )(w_packed, b_packed, seed_arr, xp)

    return out[:B, :F]


if __name__ == "__main__":
    B, F, G = 8, 16, 3   # batch, feat_size, word_gram_num

    key = jax.random.PRNGKey(0)
    keys = jax.random.split(key, 1 + 2 * G)
    x = jax.random.normal(keys[0], (B, F), jnp.float32)

    # Parameter init mirroring the module shapes: conv.weight (1,1,n) with
    # xavier_normal (std = sqrt(2/(n+n))); conv.bias (1,) default uniform.
    weights, biases = [], []
    for i in range(G):
        n = i + 1
        std = math.sqrt(2.0 / (n + n))
        w = std * jax.random.normal(keys[1 + 2 * i], (n,), jnp.float32)
        bound = 1.0 / math.sqrt(n)
        b = jax.random.uniform(keys[2 + 2 * i], (), jnp.float32, -bound, bound)
        weights.append(w)
        biases.append(b)

    out = word_embed(x, weights, biases, seed=42, word_gram_num=G)
    out = jax.block_until_ready(out)
    assert out.shape == (B, F) and out.dtype == jnp.float32

    # Sanity check vs a pure-JAX reference (pre-dropout): wherever dropout
    # kept an element, the kernel value must equal 2 * tanh(max_n conv_n(x)).
    def ref_pre_dropout(x, weights, biases):
        outs = []
        for i, (w, b) in enumerate(zip(weights, biases)):
            n = i + 1
            p = int(math.ceil((n - 1) / 2.0))
            xpad = jnp.pad(x, ((0, 0), (p, p)))
            c = b + sum(w[k] * xpad[:, k:k + F] for k in range(n))
            outs.append(c)
        return jnp.tanh(jnp.max(jnp.stack(outs, axis=1), axis=1))

    ref = np.asarray(ref_pre_dropout(x, weights, biases))
    out_np = np.asarray(out)
    kept = out_np != 0.0
    np.testing.assert_allclose(out_np[kept], 2.0 * ref[kept],
                               rtol=1e-5, atol=1e-5)
    keep_frac = float(kept.mean())
    assert 0.15 < keep_frac < 0.85, keep_frac

    print("KERNEL_OK")
</pallas_src>

<mosaic_0001>
module attributes {stable_mosaic.version = 11 : i64} {
  func.func @word_embed_kernel(%arg0: i32, %arg1: memref<3x3xf32, #tpu.memory_space<smem>>, %arg2: memref<3xf32, #tpu.memory_space<smem>>, %arg3: memref<1xi32, #tpu.memory_space<smem>>, %arg4: memref<8x256xf32, #tpu.memory_space<vmem>>, %arg5: memref<8x128xf32, #tpu.memory_space<vmem>>) attributes {dimension_semantics = [#tpu.dimension_semantics<parallel>], iteration_bounds = array<i64: 1>, scalar_prefetch = 0 : i64, scratch_operands = 0 : i64, tpu.core_type = #tpu.core_type<tc>, window_params = [{transform_indices = @transform_0, window_bounds = array<i64: 3, 3>}, {transform_indices = @transform_1, window_bounds = array<i64: 3>}, {transform_indices = @transform_2, window_bounds = array<i64: 1>}, {transform_indices = @transform_3, window_bounds = array<i64: 8, 256>}, {transform_indices = @transform_4, window_bounds = array<i64: 8, 128>}]} {
    %c0 = arith.constant 0 : index
    %c0_0 = arith.constant 0 : index
    %0 = vector.load %arg4[%c0, %c0_0] : memref<8x256xf32, #tpu.memory_space<vmem>>, vector<8x256xf32>
    %1 = vector.extract_strided_slice %0 {offsets = [0, 0], sizes = [8, 128], strides = [1, 1]} : vector<8x256xf32> to vector<8x128xf32>
    %2 = vector.extract_strided_slice %0 {offsets = [0, 1], sizes = [8, 128], strides = [1, 1]} : vector<8x256xf32> to vector<8x128xf32>
    %3 = vector.extract_strided_slice %0 {offsets = [0, 2], sizes = [8, 128], strides = [1, 1]} : vector<8x256xf32> to vector<8x128xf32>
    %c0_1 = arith.constant 0 : index
    %c0_2 = arith.constant 0 : index
    %4 = memref.load %arg1[%c0_1, %c0_2] : memref<3x3xf32, #tpu.memory_space<smem>>
    %5 = vector.broadcast %4 : f32 to vector<8x128xf32>
    %6 = arith.mulf %5, %2 : vector<8x128xf32>
    %c0_3 = arith.constant 0 : index
    %7 = memref.load %arg2[%c0_3] : memref<3xf32, #tpu.memory_space<smem>>
    %8 = vector.broadcast %7 : f32 to vector<8x128xf32>
    %9 = arith.addf %6, %8 : vector<8x128xf32>
    %c1 = arith.constant 1 : index
    %c0_4 = arith.constant 0 : index
    %10 = memref.load %arg1[%c1, %c0_4] : memref<3x3xf32, #tpu.memory_space<smem>>
    %11 = vector.broadcast %10 : f32 to vector<8x128xf32>
    %12 = arith.mulf %11, %1 : vector<8x128xf32>
    %c1_5 = arith.constant 1 : index
    %c1_6 = arith.constant 1 : index
    %13 = memref.load %arg1[%c1_5, %c1_6] : memref<3x3xf32, #tpu.memory_space<smem>>
    %14 = vector.broadcast %13 : f32 to vector<8x128xf32>
    %15 = arith.mulf %14, %2 : vector<8x128xf32>
    %16 = arith.addf %12, %15 : vector<8x128xf32>
    %c1_7 = arith.constant 1 : index
    %17 = memref.load %arg2[%c1_7] : memref<3xf32, #tpu.memory_space<smem>>
    %18 = vector.broadcast %17 : f32 to vector<8x128xf32>
    %19 = arith.addf %16, %18 : vector<8x128xf32>
    %20 = arith.maximumf %9, %19 : vector<8x128xf32>
    %c2 = arith.constant 2 : index
    %c0_8 = arith.constant 0 : index
    %21 = memref.load %arg1[%c2, %c0_8] : memref<3x3xf32, #tpu.memory_space<smem>>
    %22 = vector.broadcast %21 : f32 to vector<8x128xf32>
    %23 = arith.mulf %22, %1 : vector<8x128xf32>
    %c2_9 = arith.constant 2 : index
    %c1_10 = arith.constant 1 : index
    %24 = memref.load %arg1[%c2_9, %c1_10] : memref<3x3xf32, #tpu.memory_space<smem>>
    %25 = vector.broadcast %24 : f32 to vector<8x128xf32>
    %26 = arith.mulf %25, %2 : vector<8x128xf32>
    %27 = arith.addf %23, %26 : vector<8x128xf32>
    %c2_11 = arith.constant 2 : index
    %c2_12 = arith.constant 2 : index
    %28 = memref.load %arg1[%c2_11, %c2_12] : memref<3x3xf32, #tpu.memory_space<smem>>
    %29 = vector.broadcast %28 : f32 to vector<8x128xf32>
    %30 = arith.mulf %29, %3 : vector<8x128xf32>
    %31 = arith.addf %27, %30 : vector<8x128xf32>
    %c2_13 = arith.constant 2 : index
    %32 = memref.load %arg2[%c2_13] : memref<3xf32, #tpu.memory_space<smem>>
    %33 = vector.broadcast %32 : f32 to vector<8x128xf32>
    %34 = arith.addf %31, %33 : vector<8x128xf32>
    %35 = arith.maximumf %20, %34 : vector<8x128xf32>
    %36 = math.tanh %35 : vector<8x128xf32>
    %37 = tpu.iota {dimensions = array<i32: 0>} : vector<8x128xi32>
    %c8_i32 = arith.constant 8 : i32
    %38 = arith.muli %arg0, %c8_i32 : i32
    %39 = vector.broadcast %38 : i32 to vector<8x128xi32>
    %40 = arith.addi %37, %39 : vector<8x128xi32>
    %41 = tpu.iota {dimensions = array<i32: 1>} : vector<8x128xi32>
    %c1664525_i32 = arith.constant 1664525 : i32
    %42 = vector.broadcast %c1664525_i32 : i32 to vector<8x128xi32>
    %43 = arith.muli %40, %42 : vector<8x128xi32>
    %44 = arith.addi %43, %41 : vector<8x128xi32>
    %c0_14 = arith.constant 0 : index
    %45 = memref.load %arg3[%c0_14] : memref<1xi32, #tpu.memory_space<smem>>
    %c1013904223_i32 = arith.constant 1013904223 : i32
    %46 = arith.muli %45, %c1013904223_i32 : i32
    %47 = vector.broadcast %46 : i32 to vector<8x128xi32>
    %48 = arith.addi %44, %47 : vector<8x128xi32>
    %c16_i32 = arith.constant 16 : i32
    %49 = vector.broadcast %c16_i32 : i32 to vector<8x128xi32>
    %50 = arith.shrsi %48, %49 : vector<8x128xi32>
    %c65535_i32 = arith.constant 65535 : i32
    %51 = vector.broadcast %c65535_i32 : i32 to vector<8x128xi32>
    %52 = arith.andi %50, %51 : vector<8x128xi32>
    %53 = arith.xori %48, %52 : vector<8x128xi32>
    %c-2048144789_i32 = arith.constant -2048144789 : i32
    %54 = vector.broadcast %c-2048144789_i32 : i32 to vector<8x128xi32>
    %55 = arith.muli %53, %54 : vector<8x128xi32>
    %c13_i32 = arith.constant 13 : i32
    %56 = vector.broadcast %c13_i32 : i32 to vector<8x128xi32>
    %57 = arith.shrsi %55, %56 : vector<8x128xi32>
    %c524287_i32 = arith.constant 524287 : i32
    %58 = vector.broadcast %c524287_i32 : i32 to vector<8x128xi32>
    %59 = arith.andi %57, %58 : vector<8x128xi32>
    %60 = arith.xori %55, %59 : vector<8x128xi32>
    %c-1028477387_i32 = arith.constant -1028477387 : i32
    %61 = vector.broadcast %c-1028477387_i32 : i32 to vector<8x128xi32>
    %62 = arith.muli %60, %61 : vector<8x128xi32>
    %c16_i32_15 = arith.constant 16 : i32
    %63 = vector.broadcast %c16_i32_15 : i32 to vector<8x128xi32>
    %64 = arith.shrsi %62, %63 : vector<8x128xi32>
    %c65535_i32_16 = arith.constant 65535 : i32
    %65 = vector.broadcast %c65535_i32_16 : i32 to vector<8x128xi32>
    %66 = arith.andi %64, %65 : vector<8x128xi32>
    %67 = arith.xori %62, %66 : vector<8x128xi32>
    %c16777215_i32 = arith.constant 16777215 : i32
    %68 = vector.broadcast %c16777215_i32 : i32 to vector<8x128xi32>
    %69 = arith.andi %67, %68 : vector<8x128xi32>
    %70 = arith.sitofp %69 : vector<8x128xi32> to vector<8x128xf32>
    %cst = arith.constant 5.96046448E-8 : f32
    %71 = vector.broadcast %cst : f32 to vector<8x128xf32>
    %72 = arith.mulf %70, %71 : vector<8x128xf32>
    %cst_17 = arith.constant 5.000000e-01 : f32
    %73 = vector.broadcast %cst_17 : f32 to vector<8x128xf32>
    %74 = arith.cmpf olt, %72, %73 : vector<8x128xf32>
    %cst_18 = arith.constant 2.000000e+00 : f32
    %75 = vector.broadcast %cst_18 : f32 to vector<8x128xf32>
    %76 = arith.mulf %36, %75 : vector<8x128xf32>
    %cst_19 = arith.constant 0.000000e+00 : f32
    %77 = vector.broadcast %cst_19 : f32 to vector<8x128xf32>
    %78 = arith.select %74, %76, %77 : vector<8x128xi1>, vector<8x128xf32>
    %c0_20 = arith.constant 0 : index
    %c0_21 = arith.constant 0 : index
    %79 = vector.load %arg5[%c0_20, %c0_21] : memref<8x128xf32, #tpu.memory_space<vmem>>, vector<8x128xf32>
    tpu.vector_store %arg5[%c0_20, %c0_21], %78 {strides = array<i32>} : memref<8x128xf32, #tpu.memory_space<vmem>>, vector<8x128xf32>,
    return
  }
  func.func @transform_0(%arg0: i32) -> (i32, i32) {
    %c0_i32 = arith.constant 0 : i32
    %c0_i32_0 = arith.constant 0 : i32
    %c0_i32_1 = arith.constant 0 : i32
    return %c0_i32, %c0_i32_0 : i32, i32
  }
  func.func @transform_1(%arg0: i32) -> i32 {
    %c0_i32 = arith.constant 0 : i32
    %c0_i32_0 = arith.constant 0 : i32
    return %c0_i32 : i32
  }
  func.func @transform_2(%arg0: i32) -> i32 {
    %c0_i32 = arith.constant 0 : i32
    %c0_i32_0 = arith.constant 0 : i32
    return %c0_i32 : i32
  }
  func.func @transform_3(%arg0: i32) -> (i32, i32) {
    %c0_i32 = arith.constant 0 : i32
    %c0_i32_0 = arith.constant 0 : i32
    return %arg0, %c0_i32 : i32, i32
  }
  func.func @transform_4(%arg0: i32) -> (i32, i32) {
    %c0_i32 = arith.constant 0 : i32
    %c0_i32_0 = arith.constant 0 : i32
    return %arg0, %c0_i32 : i32, i32
  }
}

</mosaic_0001>

<llo_original>
// kernel: tpu_custom_call.1
$region0: #{tpu_custom_call.1}
  #allocation0 [shape = 'u32[]', space=smem, size = 0x4, offset = 0x4, fixed_abs, tag = 'smem constant byte address 0x4 - core index']
  #allocation1 [shape = 'u32[72,128]{1,0:T(1,128)}', space=vmem, size = 0x9000, scoped, tag = 'internal scratch']
  #allocation2 [shape = 's32[1]{0:T(128)S(6)}', space=smem, size = 0x200, scoped, tag = 'scoped memory for tpu_custom_call.1']
  %s0 = inlined_call_operand.hbm [shape: f32[3,3], index: 0, kind: input, shape index: {}]
  %s1 = inlined_call_operand.vmem [shape: f32[3], index: 1, kind: input, shape index: {}]
  %s2 = inlined_call_operand.<no memory space> [shape: s32[1], index: 2, kind: input, shape index: {}]
  %s3 = inlined_call_operand.hbm [shape: f32[8,256], index: 3, kind: input, shape index: {}]
  %s4 = inlined_call_operand.hbm [shape: f32[8,128], index: 4, kind: output, shape index: {}]
  %s5 = sld [smem:[#allocation0]]
  $region38: #{tpu_custom_call.1} parent=0
    _
  %s7 = ssub.s32 1, %s5
  %s8 = scalar_select 0, %s7, %s5
  %9 = sst [smem:[#allocation2]] %s2
  $region1: #{tpu_custom_call.1} parent=0
    #allocation3 [shape = 'u8[2048]{0}', space=smem, size = 0x800, scoped, tag = 'input window, operand 0, single buffered']
    #allocation4 [shape = 's32[1]{0}', space=sflag, size = 0x4, scoped, tag = 'scoped memory for tpu_custom_call.1']
    #allocation5 [shape = 's32[1]{0}', space=sflag, size = 0x4, scoped, tag = 'scoped memory for tpu_custom_call.1']
    #allocation6 [shape = 's32[1]{0}', space=sflag, size = 0x4, scoped, tag = 'scoped memory for tpu_custom_call.1']
    #allocation7 [shape = 's32[1]{0}', space=sflag, size = 0x4, scoped, tag = 'scoped memory for tpu_custom_call.1']
    #allocation8 [shape = 'u8[512]{0}', space=smem, size = 0x200, scoped, tag = 'input window, operand 1, single buffered']
    #allocation9 [shape = 'u8[8192]{0}', space=vmem, size = 0x2000, scoped, tag = 'input window, operand 3, single buffered']
    #allocation10 [shape = 'u8[4096]{0}', space=vmem, size = 0x1000, scoped, tag = 'output window, operand 0, single buffered']
    %10 = vsyncpa [#allocation6], 0
    %11 = vsyncpa [#allocation7], 0
    %12 = vsyncpa [#allocation4], 0
    %13 = vsyncpa [#allocation5], 0
    // Predicated region
    $region2: #{tpu_custom_call.1} parent=1 // pred_check
      _
    $region3: #{tpu_custom_call.1} parent=1 // pred_check_branch
      %15 = sbr.rel (0) target = $region5
    $region4: #{tpu_custom_call.1} parent=1 // pred_region
      %17 = vsyncadd [#allocation6], 0
      %s19 = sshll.u32 %s0, 4
      %s20 = int_to_ptr.hbm [resolvable:$true] %s19
      %22 = dma.hbm_to_smem %s20, 64, [#allocation3], [#allocation6]
    $region5: #{tpu_custom_call.1} parent=1 // pred_fallthru
      _
    // Predicated region
    $region6: #{tpu_custom_call.1} parent=1 // pred_check
      _
    $region7: #{tpu_custom_call.1} parent=1 // pred_check_branch
      %24 = sbr.rel (0) target = $region9
    $region8: #{tpu_custom_call.1} parent=1 // pred_region
      %26 = vsyncadd [#allocation7], 0
      %s28 = sshll.u32 %s1, 4
      %s29 = int_to_ptr.vmem [resolvable:$true] %s28
      %31 = dma.vmem_to_smem %s29, 16, [#allocation8], [#allocation7]
    $region9: #{tpu_custom_call.1} parent=1 // pred_fallthru
      _
    // Predicated region
    $region10: #{tpu_custom_call.1} parent=1 // pred_check
      _
    $region11: #{tpu_custom_call.1} parent=1 // pred_check_branch
      %33 = sbr.rel (0) target = $region13
    $region12: #{tpu_custom_call.1} parent=1 // pred_region
      _
    $region13: #{tpu_custom_call.1} parent=1 // pred_fallthru
      _
    // Predicated region
    $region14: #{tpu_custom_call.1} parent=1 // pred_check
      _
    $region15: #{tpu_custom_call.1} parent=1 // pred_check_branch
      %35 = sbr.rel (0) target = $region17
    $region16: #{tpu_custom_call.1} parent=1 // pred_region
      %37 = vsyncadd [#allocation4], 0
      %s39 = sshll.u32 %s3, 4
      %s40 = int_to_ptr.hbm [resolvable:$true] %s39
      %s41 = sshll.u32 [#allocation9], 4
      %s42 = int_to_ptr.vmem [resolvable:$true] %s41
      %44 = dma.hbm_to_vmem [thread:$0]  %s40, 256, %s42, [#allocation4]
    $region17: #{tpu_custom_call.1} parent=1 // pred_fallthru
      _
    // Predicated region
    $region18: #{tpu_custom_call.1} parent=1 // pred_check
      _
    $region19: #{tpu_custom_call.1} parent=1 // pred_check_branch
      %46 = sbr.rel (0) target = $region21
    $region20: #{tpu_custom_call.1} parent=1 // pred_region
      %48 = dma.done [#allocation6], 64
    $region21: #{tpu_custom_call.1} parent=1 // pred_fallthru
      _
    // Predicated region
    $region22: #{tpu_custom_call.1} parent=1 // pred_check
      _
    $region23: #{tpu_custom_call.1} parent=1 // pred_check_branch
      %50 = sbr.rel (0) target = $region25
    $region24: #{tpu_custom_call.1} parent=1 // pred_region
      %52 = dma.done [#allocation7], 16
    $region25: #{tpu_custom_call.1} parent=1 // pred_fallthru
      _
    // Predicated region
    $region26: #{tpu_custom_call.1} parent=1 // pred_check
      _
    $region27: #{tpu_custom_call.1} parent=1 // pred_check_branch
      %54 = sbr.rel (0) target = $region29
    $region28: #{tpu_custom_call.1} parent=1 // pred_region
      %56 = dma.done [#allocation4], 256
    $region29: #{tpu_custom_call.1} parent=1 // pred_fallthru
      _
    %57 = sfence
    %v58 = vld [vmem:[#allocation9] sm:$0xff]
    %v59 = vld [vmem:[#allocation9 + $0x8] sm:$0xff]
    %s60 = sld [smem:[#allocation3]]
    %v61 = vstv %s60
    %v62 = vmul.f32 %v61, %v58
    %v63 = vmul.f32 %v61, %v59
    %s64 = sld [smem:[#allocation8]]
    %v65 = vstv %s64
    %v66 = vadd.f32 %v62, %v65
    %v67 = vadd.f32 %v63, %v65
    %s68 = sld [smem:[#allocation3 + $0x80]]
    %v69 = vstv %s68
    %v70 = vmul.f32 %v69, %v58
    %s71 = sld [smem:[#allocation3 + $0x81]]
    %v72 = vstv %s71
    %v73 = vmul.f32 %v72, %v58
    %v74 = vmul.f32 %v72, %v59
    %77 = vrot.lane.b32.xlu0 %v73, 127
    %v78 = vpop.permute.xlu0 %77
    %79 = vrot.lane.b32.xlu0 %v74, 127
    %v80 = vpop.permute.xlu0 %79
    %vm81 = vcmask 1039360
    %v82 = vsel %vm81, %v78, %v80
    %v84 = vadd.f32 %v70, %v82
    %s85 = sld [smem:[#allocation8 + $0x1]]
    %v86 = vstv %s85
    %v87 = vadd.f32 %v84, %v86
    %89 = vrot.lane.b32.xlu0 %v87, 1
    %v90 = vpop.permute.xlu0 %89
    %v92 = vmax.f32 %v66, %v90
    %v93 = vmax.f32 %v67, %v90
    %s94 = sld [smem:[#allocation3 + $0x100]]
    %v95 = vstv %s94
    %v96 = vmul.f32 %v95, %v58
    %s97 = sld [smem:[#allocation3 + $0x101]]
    %v98 = vstv %s97
    %v99 = vmul.f32 %v98, %v58
    %v100 = vmul.f32 %v98, %v59
    %103 = vrot.lane.b32.xlu0 %v99, 127
    %v104 = vpop.permute.xlu0 %103
    %105 = vrot.lane.b32.xlu0 %v100, 127
    %v106 = vpop.permute.xlu0 %105
    %v107 = vsel %vm81, %v104, %v106
    %v109 = vadd.f32 %v96, %v107
    %s110 = sld [smem:[#allocation3 + $0x102]]
    %v111 = vstv %s110
    %v112 = vmul.f32 %v111, %v58
    %v113 = vmul.f32 %v111, %v59
    %116 = vrot.lane.b32.xlu0 %v112, 126
    %v117 = vpop.permute.xlu0 %116
    %118 = vrot.lane.b32.xlu0 %v113, 126
    %v119 = vpop.permute.xlu0 %118
    %vm120 = vcmask 1031168
    %v121 = vsel %vm120, %v117, %v119
    %v123 = vadd.f32 %v109, %v121
    %s124 = sld [smem:[#allocation8 + $0x2]]
    %v125 = vstv %s124
    %v126 = vadd.f32 %v123, %v125
    %128 = vrot.lane.b32.xlu0 %v126, 1
    %v129 = vpop.permute.xlu0 %128
    %v131 = vmax.f32 %v92, %v129
    %v132 = vmax.f32 %v93, %v129
    %v133 = vtanh.pop %v131
    %v134 = vtanh.pop %v132
    %v135 = vlaneseq
    %v136 = vshrl.u32 %v135, 7
    %s137 = smul.u32 0, 8
    %v138 = vstv %s137
    %v139 = vadd.s32 %v136, %v138
    %v140 = vlaneseq
    %v141 = vand.u32 %v140, 127
    %v142 = vmul.u32 %v139, 1664525
    %v143 = vadd.s32 %v142, %v141
    %s144 = sld [smem:[#allocation2]]
    %s145 = smul.u32 %s144, 1013904223
    %v146 = vstv %s145
    %v147 = vadd.s32 %v143, %v146
    %v148 = vshra.s32 %v147, 16
    %v149 = vand.u32 %v148, 65535
    %v150 = vxor.u32 %v147, %v149
    %v151 = vmul.u32 %v150, 2246822507
    %v152 = vshra.s32 %v151, 13
    %v153 = vand.u32 %v152, 524287
    %v154 = vxor.u32 %v151, %v153
    %v155 = vmul.u32 %v154, 3266489909
    %v156 = vshra.s32 %v155, 16
    %v157 = vand.u32 %v156, 65535
    %v158 = vxor.u32 %v155, %v157
    %v159 = vand.u32 %v158, 16777215
    %v160 = vcvt.s32.f32 %v159
    %v161 = vmul.f32 %v160, 5.9604645e-08
    %vm162 = vcmp.lt.f32.partialorder %v161, 0.5
    %v163 = vmul.f32 %v133, 2.0
    %v164 = vmul.f32 %v134, 2.0
    %167 = vrot.lane.b32.xlu0 %v163, 127
    %v168 = vpop.permute.xlu0 %167
    %169 = vrot.lane.b32.xlu0 %v164, 127
    %v170 = vpop.permute.xlu0 %169
    %v171 = vsel %vm81, %v168, %v170
    %v173 = vsel %vm162, %v171, 0.0
    %174 = vst [vmem:[#allocation10] sm:$0xff] %v173
    // Predicated region
    $region30: #{tpu_custom_call.1} parent=1 // pred_check
      _
    $region31: #{tpu_custom_call.1} parent=1 // pred_check_branch
      %176 = sbr.rel (0) target = $region33
    $region32: #{tpu_custom_call.1} parent=1 // pred_region
      %178 = vsyncadd [#allocation5], 0
      %s180 = sshll.u32 [#allocation10], 4
      %s181 = int_to_ptr.vmem [resolvable:$true] %s180
      %s182 = sshll.u32 %s4, 4
      %s183 = int_to_ptr.hbm [resolvable:$true] %s182
      %185 = dma.vmem_to_hbm [thread:$0]  %s181, 128, %s183, [#allocation5]
    $region33: #{tpu_custom_call.1} parent=1 // pred_fallthru
      _
    // Predicated region
    $region34: #{tpu_custom_call.1} parent=1 // pred_check
      _
    $region35: #{tpu_custom_call.1} parent=1 // pred_check_branch
      %187 = sbr.rel (0) target = $region37
    $region36: #{tpu_custom_call.1} parent=1 // pred_region
      %189 = dma.done [#allocation5], 128
    $region37: #{tpu_custom_call.1} parent=1 // pred_fallthru
      _
    %190 = vsyncpa [#allocation4], 1
    %191 = vsyncpa [#allocation5], 1
    %192 = vsyncpa [#allocation6], 1
    %193 = vsyncpa [#allocation7], 1

</llo_original>
